<compile_context>
chip_gen: v5e
topology: v5e:2x2
jax: 0.10.0
libtpu: 0.0.40
codegen_flags: <defaults>
</compile_context>

<pallas_src>
import numpy as np
import jax
import jax.numpy as jnp
from jax import lax
from jax.experimental import pallas as pl
from jax.experimental.pallas import tpu as pltpu

_LANES = 128          # lane-dense last dim -> unmasked stores
_SUBLANES = 8
_MAX_TILE_ROWS = 1024  # (1024,128) f32 tile = 512 KiB per grid step
_MIN_TILE_ROWS = 256   # below this, per-step overhead dominates -> pad instead

# int32 views of the uint32 hashing constants.  Wrapping int32 arithmetic has
# the same bit pattern as uint32, which avoids signed<->unsigned converts.
_GOLDEN = -1640531527   # 0x9E3779B9
_MUL1 = 2146104621      # 0x7FEB352D
_MUL2 = -2073450869     # 0x846CA68B


def _round_up(x, m):
    return ((x + m - 1) // m) * m


def _srl(x, n):
    """Logical right shift on int32 (portable: Mosaic + interpret)."""
    return lax.shift_right_logical(x, jnp.full(x.shape, n, jnp.int32))


def _mix32(x):
    """lowbias32 avalanche hash (Wellons), on wrapping int32."""
    x = x ^ _srl(x, 16)
    x = x * jnp.int32(_MUL1)
    x = x ^ _srl(x, 15)
    x = x * jnp.int32(_MUL2)
    x = x ^ _srl(x, 16)
    return x


def _ndtri_f32(p):
    """Acklam's rational approximation of the inverse normal CDF (float32).

    Uses only add/mul/div/log/sqrt/where, so it lowers on Mosaic and interpret.
    """
    a1, a2, a3 = -3.969683028665376e+01, 2.209460984245205e+02, -2.759285104469687e+02
    a4, a5, a6 = 1.383577518672690e+02, -3.066479806614716e+01, 2.506628277459239e+00
    b1, b2, b3 = -5.447609879822406e+01, 1.615858368580409e+02, -1.556989798598866e+02
    b4, b5 = 6.680131188771972e+01, -1.328068155288572e+01
    c1, c2, c3 = -7.784894002430293e-03, -3.223964580411365e-01, -2.400758277161838e+00
    c4, c5, c6 = -2.549732539343734e+00, 4.374664141464968e+00, 2.938163982698783e+00
    d1, d2, d3, d4 = (7.784695709041462e-03, 3.224671290700398e-01,
                      2.445134137142996e+00, 3.754408661907416e+00)
    plow = 0.02425
    phigh = 1.0 - plow

    # Central region (input clamped so the rational stays well conditioned even
    # for elements where the tail branch is the one actually selected).
    q = jnp.clip(p, plow, phigh) - 0.5
    r = q * q
    num_c = (((((a1 * r + a2) * r + a3) * r + a4) * r + a5) * r + a6) * q
    den_c = ((((b1 * r + b2) * r + b3) * r + b4) * r + b5) * r + 1.0
    x_central = num_c / den_c

    # Tails, folded to a single log/sqrt using ndtri(1-p) = -ndtri(p).
    pt = jnp.minimum(p, 1.0 - p)            # in [2^-25, 0.5] -> log finite
    t = jnp.sqrt(-2.0 * jnp.log(pt))
    num_t = ((((c1 * t + c2) * t + c3) * t + c4) * t + c5) * t + c6
    den_t = (((d1 * t + d2) * t + d3) * t + d4) * t + 1.0
    x_tail = num_t / den_t                   # low-tail value (negative)
    x_tail = jnp.where(p < 0.5, x_tail, -x_tail)

    is_tail = jnp.logical_or(p < plow, p > phigh)
    return jnp.where(is_tail, x_tail, x_central)


# ----------------------------------------------------------------------------
# Pallas kernel: fill one (tile_rows, 128) output tile with N(0,1) samples.
# Write-only: no tensor inputs, HBM traffic == output bytes.
# ----------------------------------------------------------------------------
def _gen_noise_kernel(seed_ref, o_ref):
    tr, lanes = o_ref.shape
    base = pl.program_id(0) * (tr * lanes)            # global element offset
    row = lax.broadcasted_iota(jnp.int32, (tr, lanes), 0)
    col = lax.broadcasted_iota(jnp.int32, (tr, lanes), 1)
    idx = base + row * lanes + col

    # Per-seed counter offset (golden-ratio Weyl step) -> decorrelated streams
    # for adjacent seeds and grid steps; then full avalanche (2x lowbias32).
    x = idx + seed_ref[0] * jnp.int32(_GOLDEN)
    x = _mix32(x)
    x = _mix32(x)

    # Top 24 bits -> uniform strictly inside (0, 1).
    hi24 = _srl(x, 8)                                   # in [0, 2^24)
    u = (hi24.astype(jnp.float32) + 0.5) * (1.0 / 16777216.0)

    # TODO(synk): for integer output dtypes torch's type_as truncates normals
    # to ints; astype here rounds toward zero too but is not bit-identical.
    o_ref[...] = _ndtri_f32(u).astype(o_ref.dtype)


# ----------------------------------------------------------------------------
# Tiling: avoid padding (and hence the post-kernel slice copy) whenever possible.
# ----------------------------------------------------------------------------
def _pick_tiling(m):
    """Return (tile_rows, rows_padded) for a lane-dense (rows, 128) slab."""
    rows = -(-m // _LANES)                    # ceil(m / 128)
    if rows <= _MAX_TILE_ROWS:
        # Single full-extent block: grid == 1, no row padding (full-array
        # blocks are exempt from the (8,128) divisibility rule).
        return rows, rows
    if rows % _SUBLANES == 0:
        # Largest tile that is a multiple of 8 rows, exactly divides `rows`
        # (-> rows_padded == rows, no slice copy) and fits the size cap.
        r8 = rows // _SUBLANES
        for d in range(min(_MAX_TILE_ROWS // _SUBLANES, r8), 0, -1):
            if r8 % d == 0:
                tile_rows = d * _SUBLANES
                if tile_rows >= _MIN_TILE_ROWS:
                    return tile_rows, rows
                break
    # Rare fallback (awkward sizes): pad rows; costs one output slice copy.
    return _MAX_TILE_ROWS, _round_up(rows, _MAX_TILE_ROWS)


def _gen_normal_noise(out_shape, dtype, seed):
    """Generate an i.i.d. N(0,1) array of `out_shape` / `dtype` with a Pallas kernel."""
    m = int(np.prod(out_shape))
    assert m > 0
    tile_rows, rows_padded = _pick_tiling(m)
    grid = rows_padded // tile_rows
    seed_arr = jnp.atleast_1d(jnp.asarray(seed, dtype=jnp.int32)).reshape(-1)[:1]

    flat = pl.pallas_call(
        _gen_noise_kernel,
        out_shape=jax.ShapeDtypeStruct((rows_padded, _LANES), dtype),
        grid_spec=pltpu.PrefetchScalarGridSpec(
            num_scalar_prefetch=1,                      # seed lives in SMEM
            grid=(grid,),
            in_specs=[],                                # write-only kernel
            out_specs=pl.BlockSpec((tile_rows, _LANES),
                                   lambda i, seed_ref: (i, 0)),
        ),
        compiler_params=pltpu.CompilerParams(
            dimension_semantics=("parallel",),          # independent grid steps
        ),
    )(seed_arr)

    if rows_padded * _LANES == m:
        return flat.reshape(out_shape)                  # pure reshape, no copy
    # Ragged sizes only: pay one slice copy of the output.
    return flat.reshape(-1)[:m].reshape(out_shape)


# ----------------------------------------------------------------------------
# GenNoise (JAX / Pallas)
# ----------------------------------------------------------------------------
class GenNoisePallas:
    def __init__(self, dim2):
        self.dim2 = dim2

    def __call__(self, x, seed=0):
        # Output shape = input shape with dim 1 replaced by dim2; dtype of input.
        out_shape = list(x.shape)
        assert len(out_shape) >= 2
        out_shape[1] = self.dim2
        # TODO(synk): bitwise parity with torch's global-RNG `normal_()` is not
        # reproducible; output is distributionally equivalent (i.i.d. N(0,1)).
        return _gen_normal_noise(tuple(out_shape), x.dtype, seed)


# ----------------------------------------------------------------------------
# Demo / self-check
# ----------------------------------------------------------------------------
if __name__ == "__main__":
    key = jax.random.PRNGKey(0)
    k_in, k_seed = jax.random.split(key)

    N, C, H, W = 2, 4, 16, 16
    dim2 = 8
    x = jax.random.normal(k_in, (N, C, H, W), dtype=jnp.float32)
    seed = jax.random.randint(k_seed, (1,), 0, jnp.iinfo(jnp.int32).max,
                              dtype=jnp.int32)

    model = GenNoisePallas(dim2)
    out = jax.block_until_ready(model(x, seed=seed))

    # Shape / dtype semantics of the reference module.
    assert out.shape == (N, dim2, H, W), out.shape
    assert out.dtype == x.dtype, out.dtype

    o = np.asarray(out, dtype=np.float64)
    assert np.all(np.isfinite(o))
    mean, std = o.mean(), o.std()
    # ~7-sigma bounds for 4096 i.i.d. N(0,1) samples.
    assert abs(mean) < 0.12, f"mean {mean} too far from 0"
    assert abs(std - 1.0) < 0.12, f"std {std} too far from 1"
    assert o.std() > 0.5  # not degenerate

    # Determinism: same explicit seed -> identical noise.
    out2 = jax.block_until_ready(model(x, seed=seed))
    np.testing.assert_array_equal(np.asarray(out), np.asarray(out2))

    # Different seed -> different noise.
    out3 = jax.block_until_ready(model(x, seed=seed + 1))
    assert not np.array_equal(np.asarray(out), np.asarray(out3))

    print("KERNEL_OK")
</pallas_src>

<mosaic_0001>
module attributes {stable_mosaic.version = 11 : i64} {
  func.func @_gen_noise_kernel(%arg0: i32, %arg1: memref<1xi32, #tpu.memory_space<smem>>, %arg2: memref<32x128xf32, #tpu.memory_space<vmem>>) attributes {dimension_semantics = [#tpu.dimension_semantics<parallel>], iteration_bounds = array<i64: 1>, scalar_prefetch = 1 : i64, scratch_operands = 0 : i64, tpu.core_type = #tpu.core_type<tc>, window_params = [{transform_indices = @transform_0, window_bounds = array<i64: 32, 128>}]} {
    %c4096_i32 = arith.constant 4096 : i32
    %0 = arith.muli %arg0, %c4096_i32 : i32
    %1 = tpu.iota {dimensions = array<i32: 0>} : vector<32x128xi32>
    %2 = tpu.iota {dimensions = array<i32: 1>} : vector<32x128xi32>
    %c128_i32 = arith.constant 128 : i32
    %3 = vector.broadcast %c128_i32 : i32 to vector<32x128xi32>
    %4 = arith.muli %1, %3 : vector<32x128xi32>
    %5 = vector.broadcast %0 : i32 to vector<32x128xi32>
    %6 = arith.addi %5, %4 : vector<32x128xi32>
    %7 = arith.addi %6, %2 : vector<32x128xi32>
    %c0 = arith.constant 0 : index
    %8 = memref.load %arg1[%c0] : memref<1xi32, #tpu.memory_space<smem>>
    %c-1640531527_i32 = arith.constant -1640531527 : i32
    %9 = arith.muli %8, %c-1640531527_i32 : i32
    %10 = vector.broadcast %9 : i32 to vector<32x128xi32>
    %11 = arith.addi %7, %10 : vector<32x128xi32>
    %c16_i32 = arith.constant 16 : i32
    %12 = vector.broadcast %c16_i32 : i32 to vector<32x128xi32>
    %13 = arith.shrui %11, %12 : vector<32x128xi32>
    %14 = arith.xori %11, %13 : vector<32x128xi32>
    %c2146104621_i32 = arith.constant 2146104621 : i32
    %15 = vector.broadcast %c2146104621_i32 : i32 to vector<32x128xi32>
    %16 = arith.muli %14, %15 : vector<32x128xi32>
    %c15_i32 = arith.constant 15 : i32
    %17 = vector.broadcast %c15_i32 : i32 to vector<32x128xi32>
    %18 = arith.shrui %16, %17 : vector<32x128xi32>
    %19 = arith.xori %16, %18 : vector<32x128xi32>
    %c-2073450869_i32 = arith.constant -2073450869 : i32
    %20 = vector.broadcast %c-2073450869_i32 : i32 to vector<32x128xi32>
    %21 = arith.muli %19, %20 : vector<32x128xi32>
    %c16_i32_0 = arith.constant 16 : i32
    %22 = vector.broadcast %c16_i32_0 : i32 to vector<32x128xi32>
    %23 = arith.shrui %21, %22 : vector<32x128xi32>
    %24 = arith.xori %21, %23 : vector<32x128xi32>
    %c16_i32_1 = arith.constant 16 : i32
    %25 = vector.broadcast %c16_i32_1 : i32 to vector<32x128xi32>
    %26 = arith.shrui %24, %25 : vector<32x128xi32>
    %27 = arith.xori %24, %26 : vector<32x128xi32>
    %c2146104621_i32_2 = arith.constant 2146104621 : i32
    %28 = vector.broadcast %c2146104621_i32_2 : i32 to vector<32x128xi32>
    %29 = arith.muli %27, %28 : vector<32x128xi32>
    %c15_i32_3 = arith.constant 15 : i32
    %30 = vector.broadcast %c15_i32_3 : i32 to vector<32x128xi32>
    %31 = arith.shrui %29, %30 : vector<32x128xi32>
    %32 = arith.xori %29, %31 : vector<32x128xi32>
    %c-2073450869_i32_4 = arith.constant -2073450869 : i32
    %33 = vector.broadcast %c-2073450869_i32_4 : i32 to vector<32x128xi32>
    %34 = arith.muli %32, %33 : vector<32x128xi32>
    %c16_i32_5 = arith.constant 16 : i32
    %35 = vector.broadcast %c16_i32_5 : i32 to vector<32x128xi32>
    %36 = arith.shrui %34, %35 : vector<32x128xi32>
    %37 = arith.xori %34, %36 : vector<32x128xi32>
    %c8_i32 = arith.constant 8 : i32
    %38 = vector.broadcast %c8_i32 : i32 to vector<32x128xi32>
    %39 = arith.shrui %37, %38 : vector<32x128xi32>
    %40 = arith.sitofp %39 : vector<32x128xi32> to vector<32x128xf32>
    %cst = arith.constant 5.000000e-01 : f32
    %41 = vector.broadcast %cst : f32 to vector<32x128xf32>
    %42 = arith.addf %40, %41 : vector<32x128xf32>
    %cst_6 = arith.constant 5.96046448E-8 : f32
    %43 = vector.broadcast %cst_6 : f32 to vector<32x128xf32>
    %44 = arith.mulf %42, %43 : vector<32x128xf32>
    %cst_7 = arith.constant 2.425000e-02 : f32
    %cst_8 = arith.constant 9.757500e-01 : f32
    %45 = vector.broadcast %cst_7 : f32 to vector<32x128xf32>
    %46 = arith.maximumf %45, %44 : vector<32x128xf32>
    %47 = vector.broadcast %cst_8 : f32 to vector<32x128xf32>
    %48 = arith.minimumf %47, %46 : vector<32x128xf32>
    %cst_9 = arith.constant 5.000000e-01 : f32
    %49 = vector.broadcast %cst_9 : f32 to vector<32x128xf32>
    %50 = arith.subf %48, %49 : vector<32x128xf32>
    %51 = arith.mulf %50, %50 : vector<32x128xf32>
    %cst_10 = arith.constant -39.6968307 : f32
    %52 = vector.broadcast %cst_10 : f32 to vector<32x128xf32>
    %53 = arith.mulf %52, %51 : vector<32x128xf32>
    %cst_11 = arith.constant 220.946106 : f32
    %54 = vector.broadcast %cst_11 : f32 to vector<32x128xf32>
    %55 = arith.addf %53, %54 : vector<32x128xf32>
    %56 = arith.mulf %55, %51 : vector<32x128xf32>
    %cst_12 = arith.constant -275.928497 : f32
    %57 = vector.broadcast %cst_12 : f32 to vector<32x128xf32>
    %58 = arith.addf %56, %57 : vector<32x128xf32>
    %59 = arith.mulf %58, %51 : vector<32x128xf32>
    %cst_13 = arith.constant 138.357758 : f32
    %60 = vector.broadcast %cst_13 : f32 to vector<32x128xf32>
    %61 = arith.addf %59, %60 : vector<32x128xf32>
    %62 = arith.mulf %61, %51 : vector<32x128xf32>
    %cst_14 = arith.constant -30.6647987 : f32
    %63 = vector.broadcast %cst_14 : f32 to vector<32x128xf32>
    %64 = arith.addf %62, %63 : vector<32x128xf32>
    %65 = arith.mulf %64, %51 : vector<32x128xf32>
    %cst_15 = arith.constant 2.50662827 : f32
    %66 = vector.broadcast %cst_15 : f32 to vector<32x128xf32>
    %67 = arith.addf %65, %66 : vector<32x128xf32>
    %68 = arith.mulf %67, %50 : vector<32x128xf32>
    %cst_16 = arith.constant -54.4760971 : f32
    %69 = vector.broadcast %cst_16 : f32 to vector<32x128xf32>
    %70 = arith.mulf %69, %51 : vector<32x128xf32>
    %cst_17 = arith.constant 161.585831 : f32
    %71 = vector.broadcast %cst_17 : f32 to vector<32x128xf32>
    %72 = arith.addf %70, %71 : vector<32x128xf32>
    %73 = arith.mulf %72, %51 : vector<32x128xf32>
    %cst_18 = arith.constant -155.698975 : f32
    %74 = vector.broadcast %cst_18 : f32 to vector<32x128xf32>
    %75 = arith.addf %73, %74 : vector<32x128xf32>
    %76 = arith.mulf %75, %51 : vector<32x128xf32>
    %cst_19 = arith.constant 66.8013153 : f32
    %77 = vector.broadcast %cst_19 : f32 to vector<32x128xf32>
    %78 = arith.addf %76, %77 : vector<32x128xf32>
    %79 = arith.mulf %78, %51 : vector<32x128xf32>
    %cst_20 = arith.constant -13.2806816 : f32
    %80 = vector.broadcast %cst_20 : f32 to vector<32x128xf32>
    %81 = arith.addf %79, %80 : vector<32x128xf32>
    %82 = arith.mulf %81, %51 : vector<32x128xf32>
    %cst_21 = arith.constant 1.000000e+00 : f32
    %83 = vector.broadcast %cst_21 : f32 to vector<32x128xf32>
    %84 = arith.addf %82, %83 : vector<32x128xf32>
    %85 = arith.divf %68, %84 : vector<32x128xf32>
    %cst_22 = arith.constant 1.000000e+00 : f32
    %86 = vector.broadcast %cst_22 : f32 to vector<32x128xf32>
    %87 = arith.subf %86, %44 : vector<32x128xf32>
    %88 = arith.minimumf %44, %87 : vector<32x128xf32>
    %89 = math.log %88 : vector<32x128xf32>
    %cst_23 = arith.constant -2.000000e+00 : f32
    %90 = vector.broadcast %cst_23 : f32 to vector<32x128xf32>
    %91 = arith.mulf %90, %89 : vector<32x128xf32>
    %92 = math.sqrt %91 : vector<32x128xf32>
    %cst_24 = arith.constant -0.0077848942 : f32
    %93 = vector.broadcast %cst_24 : f32 to vector<32x128xf32>
    %94 = arith.mulf %93, %92 : vector<32x128xf32>
    %cst_25 = arith.constant -0.322396457 : f32
    %95 = vector.broadcast %cst_25 : f32 to vector<32x128xf32>
    %96 = arith.addf %94, %95 : vector<32x128xf32>
    %97 = arith.mulf %96, %92 : vector<32x128xf32>
    %cst_26 = arith.constant -2.40075827 : f32
    %98 = vector.broadcast %cst_26 : f32 to vector<32x128xf32>
    %99 = arith.addf %97, %98 : vector<32x128xf32>
    %100 = arith.mulf %99, %92 : vector<32x128xf32>
    %cst_27 = arith.constant -2.54973245 : f32
    %101 = vector.broadcast %cst_27 : f32 to vector<32x128xf32>
    %102 = arith.addf %100, %101 : vector<32x128xf32>
    %103 = arith.mulf %102, %92 : vector<32x128xf32>
    %cst_28 = arith.constant 4.37466431 : f32
    %104 = vector.broadcast %cst_28 : f32 to vector<32x128xf32>
    %105 = arith.addf %103, %104 : vector<32x128xf32>
    %106 = arith.mulf %105, %92 : vector<32x128xf32>
    %cst_29 = arith.constant 2.938164 : f32
    %107 = vector.broadcast %cst_29 : f32 to vector<32x128xf32>
    %108 = arith.addf %106, %107 : vector<32x128xf32>
    %cst_30 = arith.constant 0.00778469583 : f32
    %109 = vector.broadcast %cst_30 : f32 to vector<32x128xf32>
    %110 = arith.mulf %109, %92 : vector<32x128xf32>
    %cst_31 = arith.constant 0.322467119 : f32
    %111 = vector.broadcast %cst_31 : f32 to vector<32x128xf32>
    %112 = arith.addf %110, %111 : vector<32x128xf32>
    %113 = arith.mulf %112, %92 : vector<32x128xf32>
    %cst_32 = arith.constant 2.44513416 : f32
    %114 = vector.broadcast %cst_32 : f32 to vector<32x128xf32>
    %115 = arith.addf %113, %114 : vector<32x128xf32>
    %116 = arith.mulf %115, %92 : vector<32x128xf32>
    %cst_33 = arith.constant 3.7544086 : f32
    %117 = vector.broadcast %cst_33 : f32 to vector<32x128xf32>
    %118 = arith.addf %116, %117 : vector<32x128xf32>
    %119 = arith.mulf %118, %92 : vector<32x128xf32>
    %cst_34 = arith.constant 1.000000e+00 : f32
    %120 = vector.broadcast %cst_34 : f32 to vector<32x128xf32>
    %121 = arith.addf %119, %120 : vector<32x128xf32>
    %122 = arith.divf %108, %121 : vector<32x128xf32>
    %cst_35 = arith.constant 5.000000e-01 : f32
    %123 = vector.broadcast %cst_35 : f32 to vector<32x128xf32>
    %124 = arith.cmpf olt, %44, %123 : vector<32x128xf32>
    %cst_36 = arith.constant 0.000000e+00 : f32
    %125 = vector.broadcast %cst_36 : f32 to vector<32x128xf32>
    %126 = arith.subf %125, %122 : vector<32x128xf32>
    %127 = arith.select %124, %122, %126 : vector<32x128xi1>, vector<32x128xf32>
    %cst_37 = arith.constant 2.425000e-02 : f32
    %128 = vector.broadcast %cst_37 : f32 to vector<32x128xf32>
    %129 = arith.cmpf olt, %44, %128 : vector<32x128xf32>
    %cst_38 = arith.constant 9.757500e-01 : f32
    %130 = vector.broadcast %cst_38 : f32 to vector<32x128xf32>
    %131 = arith.cmpf ogt, %44, %130 : vector<32x128xf32>
    %132 = arith.ori %129, %131 : vector<32x128xi1>
    %133 = arith.select %132, %127, %85 : vector<32x128xi1>, vector<32x128xf32>
    %c0_39 = arith.constant 0 : index
    %c0_40 = arith.constant 0 : index
    %134 = vector.load %arg2[%c0_39, %c0_40] : memref<32x128xf32, #tpu.memory_space<vmem>>, vector<32x128xf32>
    tpu.vector_store %arg2[%c0_39, %c0_40], %133 {strides = array<i32>} : memref<32x128xf32, #tpu.memory_space<vmem>>, vector<32x128xf32>,
    return
  }
  func.func @transform_0(%arg0: i32, %arg1: memref<1xi32, #tpu.memory_space<smem>>) -> (i32, i32) {
    %c0_i32 = arith.constant 0 : i32
    %c0_i32_0 = arith.constant 0 : i32
    return %arg0, %c0_i32 : i32, i32
  }
}

</mosaic_0001>

<llo_original>
// kernel: tpu_custom_call.1
$region0: #{tpu_custom_call.1}
  #allocation0 [shape = 'u32[]', space=smem, size = 0x4, offset = 0x4, fixed_abs, tag = 'smem constant byte address 0x4 - core index']
  #allocation1 [shape = 'u32[72,128]{1,0:T(1,128)}', space=vmem, size = 0x9000, scoped, tag = 'internal scratch']
  #allocation2 [shape = 's32[1]{0}', space=sflag, size = 0x4, scoped, tag = 'scoped memory for tpu_custom_call.1']
  #allocation3 [shape = 's32[1]{0:T(128)S(6)}', space=smem, size = 0x200, scoped, tag = 'prefetched SMEM operand 0']
  %s0 = inlined_call_operand.<no memory space> [shape: s32[1], index: 0, kind: input, shape index: {}]
  %s1 = inlined_call_operand.hbm [shape: f32[32,128], index: 1, kind: output, shape index: {}]
  %s2 = sld [smem:[#allocation0]]
  $region10: #{tpu_custom_call.1} parent=0
    _
  %s4 = ssub.s32 1, %s2
  %s5 = scalar_select 0, %s4, %s2
  %6 = sst [smem:[#allocation3]] %s0
  $region1: #{tpu_custom_call.1} parent=0
    #allocation4 [shape = 'u8[16384]{0}', space=vmem, size = 0x4000, scoped, tag = 'output window, operand 0, single buffered']
    #allocation5 [shape = 's32[1]{0}', space=sflag, size = 0x4, scoped, tag = 'scoped memory for tpu_custom_call.1']
    %7 = vsyncpa [#allocation5], 0
    %s8 = smul.u32 0, 4096
    %v9 = vlaneseq
    %v10 = vshrl.u32 %v9, 7
    %v11 = vadd.s32 %v10, 8
    %v12 = vadd.s32 %v10, 16
    %v13 = vadd.s32 %v10, 24
    %v14 = vlaneseq
    %v15 = vand.u32 %v14, 127
    %v16 = vmul.u32 %v10, 128
    %v17 = vmul.u32 %v11, 128
    %v18 = vmul.u32 %v12, 128
    %v19 = vmul.u32 %v13, 128
    %v20 = vstv %s8
    %v21 = vadd.s32 %v20, %v16
    %v22 = vadd.s32 %v20, %v17
    %v23 = vadd.s32 %v20, %v18
    %v24 = vadd.s32 %v20, %v19
    %v25 = vadd.s32 %v21, %v15
    %v26 = vadd.s32 %v22, %v15
    %v27 = vadd.s32 %v23, %v15
    %v28 = vadd.s32 %v24, %v15
    %s29 = sld [smem:[#allocation3]]
    %s30 = smul.u32 %s29, 2654435769
    %v31 = vstv %s30
    %v32 = vadd.s32 %v25, %v31
    %v33 = vadd.s32 %v26, %v31
    %v34 = vadd.s32 %v27, %v31
    %v35 = vadd.s32 %v28, %v31
    %v36 = vshrl.u32 %v32, 16
    %v37 = vshrl.u32 %v33, 16
    %v38 = vshrl.u32 %v34, 16
    %v39 = vshrl.u32 %v35, 16
    %v40 = vxor.u32 %v32, %v36
    %v41 = vxor.u32 %v33, %v37
    %v42 = vxor.u32 %v34, %v38
    %v43 = vxor.u32 %v35, %v39
    %v44 = vmul.u32 %v40, 2146104621
    %v45 = vmul.u32 %v41, 2146104621
    %v46 = vmul.u32 %v42, 2146104621
    %v47 = vmul.u32 %v43, 2146104621
    %v48 = vshrl.u32 %v44, 15
    %v49 = vshrl.u32 %v45, 15
    %v50 = vshrl.u32 %v46, 15
    %v51 = vshrl.u32 %v47, 15
    %v52 = vxor.u32 %v44, %v48
    %v53 = vxor.u32 %v45, %v49
    %v54 = vxor.u32 %v46, %v50
    %v55 = vxor.u32 %v47, %v51
    %v56 = vmul.u32 %v52, 2221516427
    %v57 = vmul.u32 %v53, 2221516427
    %v58 = vmul.u32 %v54, 2221516427
    %v59 = vmul.u32 %v55, 2221516427
    %v60 = vshrl.u32 %v56, 16
    %v61 = vshrl.u32 %v57, 16
    %v62 = vshrl.u32 %v58, 16
    %v63 = vshrl.u32 %v59, 16
    %v64 = vxor.u32 %v56, %v60
    %v65 = vxor.u32 %v57, %v61
    %v66 = vxor.u32 %v58, %v62
    %v67 = vxor.u32 %v59, %v63
    %v68 = vshrl.u32 %v64, 16
    %v69 = vshrl.u32 %v65, 16
    %v70 = vshrl.u32 %v66, 16
    %v71 = vshrl.u32 %v67, 16
    %v72 = vxor.u32 %v64, %v68
    %v73 = vxor.u32 %v65, %v69
    %v74 = vxor.u32 %v66, %v70
    %v75 = vxor.u32 %v67, %v71
    %v76 = vmul.u32 %v72, 2146104621
    %v77 = vmul.u32 %v73, 2146104621
    %v78 = vmul.u32 %v74, 2146104621
    %v79 = vmul.u32 %v75, 2146104621
    %v80 = vshrl.u32 %v76, 15
    %v81 = vshrl.u32 %v77, 15
    %v82 = vshrl.u32 %v78, 15
    %v83 = vshrl.u32 %v79, 15
    %v84 = vxor.u32 %v76, %v80
    %v85 = vxor.u32 %v77, %v81
    %v86 = vxor.u32 %v78, %v82
    %v87 = vxor.u32 %v79, %v83
    %v88 = vmul.u32 %v84, 2221516427
    %v89 = vmul.u32 %v85, 2221516427
    %v90 = vmul.u32 %v86, 2221516427
    %v91 = vmul.u32 %v87, 2221516427
    %v92 = vshrl.u32 %v88, 16
    %v93 = vshrl.u32 %v89, 16
    %v94 = vshrl.u32 %v90, 16
    %v95 = vshrl.u32 %v91, 16
    %v96 = vxor.u32 %v88, %v92
    %v97 = vxor.u32 %v89, %v93
    %v98 = vxor.u32 %v90, %v94
    %v99 = vxor.u32 %v91, %v95
    %v100 = vshrl.u32 %v96, 8
    %v101 = vshrl.u32 %v97, 8
    %v102 = vshrl.u32 %v98, 8
    %v103 = vshrl.u32 %v99, 8
    %v104 = vcvt.s32.f32 %v100
    %v105 = vcvt.s32.f32 %v101
    %v106 = vcvt.s32.f32 %v102
    %v107 = vcvt.s32.f32 %v103
    %v108 = vadd.f32 %v104, 0.5
    %v109 = vadd.f32 %v105, 0.5
    %v110 = vadd.f32 %v106, 0.5
    %v111 = vadd.f32 %v107, 0.5
    %v112 = vmul.f32 %v108, 5.9604645e-08
    %v113 = vmul.f32 %v109, 5.9604645e-08
    %v114 = vmul.f32 %v110, 5.9604645e-08
    %v115 = vmul.f32 %v111, 5.9604645e-08
    %v116 = vmax.f32 %v112, 0.02425
    %v117 = vmax.f32 %v113, 0.02425
    %v118 = vmax.f32 %v114, 0.02425
    %v119 = vmax.f32 %v115, 0.02425
    %v120 = vmin.f32 %v116, 0.97575
    %v121 = vmin.f32 %v117, 0.97575
    %v122 = vmin.f32 %v118, 0.97575
    %v123 = vmin.f32 %v119, 0.97575
    %v124 = vsub.f32 %v120, 0.5
    %v125 = vsub.f32 %v121, 0.5
    %v126 = vsub.f32 %v122, 0.5
    %v127 = vsub.f32 %v123, 0.5
    %v128 = vmul.f32 %v124, %v124
    %v129 = vmul.f32 %v125, %v125
    %v130 = vmul.f32 %v126, %v126
    %v131 = vmul.f32 %v127, %v127
    %v132 = vmul.f32 %v128, -39.69683
    %v133 = vmul.f32 %v129, -39.69683
    %v134 = vmul.f32 %v130, -39.69683
    %v135 = vmul.f32 %v131, -39.69683
    %v136 = vadd.f32 %v132, 220.9461
    %v137 = vadd.f32 %v133, 220.9461
    %v138 = vadd.f32 %v134, 220.9461
    %v139 = vadd.f32 %v135, 220.9461
    %v140 = vmul.f32 %v136, %v128
    %v141 = vmul.f32 %v137, %v129
    %v142 = vmul.f32 %v138, %v130
    %v143 = vmul.f32 %v139, %v131
    %v144 = vadd.f32 %v140, -275.9285
    %v145 = vadd.f32 %v141, -275.9285
    %v146 = vadd.f32 %v142, -275.9285
    %v147 = vadd.f32 %v143, -275.9285
    %v148 = vmul.f32 %v144, %v128
    %v149 = vmul.f32 %v145, %v129
    %v150 = vmul.f32 %v146, %v130
    %v151 = vmul.f32 %v147, %v131
    %v152 = vadd.f32 %v148, 138.35776
    %v153 = vadd.f32 %v149, 138.35776
    %v154 = vadd.f32 %v150, 138.35776
    %v155 = vadd.f32 %v151, 138.35776
    %v156 = vmul.f32 %v152, %v128
    %v157 = vmul.f32 %v153, %v129
    %v158 = vmul.f32 %v154, %v130
    %v159 = vmul.f32 %v155, %v131
    %v160 = vadd.f32 %v156, -30.664799
    %v161 = vadd.f32 %v157, -30.664799
    %v162 = vadd.f32 %v158, -30.664799
    %v163 = vadd.f32 %v159, -30.664799
    %v164 = vmul.f32 %v160, %v128
    %v165 = vmul.f32 %v161, %v129
    %v166 = vmul.f32 %v162, %v130
    %v167 = vmul.f32 %v163, %v131
    %v168 = vadd.f32 %v164, 2.5066283
    %v169 = vadd.f32 %v165, 2.5066283
    %v170 = vadd.f32 %v166, 2.5066283
    %v171 = vadd.f32 %v167, 2.5066283
    %v172 = vmul.f32 %v168, %v124
    %v173 = vmul.f32 %v169, %v125
    %v174 = vmul.f32 %v170, %v126
    %v175 = vmul.f32 %v171, %v127
    %v176 = vmul.f32 %v128, -54.476097
    %v177 = vmul.f32 %v129, -54.476097
    %v178 = vmul.f32 %v130, -54.476097
    %v179 = vmul.f32 %v131, -54.476097
    %v180 = vadd.f32 %v176, 161.58583
    %v181 = vadd.f32 %v177, 161.58583
    %v182 = vadd.f32 %v178, 161.58583
    %v183 = vadd.f32 %v179, 161.58583
    %v184 = vmul.f32 %v180, %v128
    %v185 = vmul.f32 %v181, %v129
    %v186 = vmul.f32 %v182, %v130
    %v187 = vmul.f32 %v183, %v131
    %v188 = vadd.f32 %v184, -155.69897
    %v189 = vadd.f32 %v185, -155.69897
    %v190 = vadd.f32 %v186, -155.69897
    %v191 = vadd.f32 %v187, -155.69897
    %v192 = vmul.f32 %v188, %v128
    %v193 = vmul.f32 %v189, %v129
    %v194 = vmul.f32 %v190, %v130
    %v195 = vmul.f32 %v191, %v131
    %v196 = vadd.f32 %v192, 66.801315
    %v197 = vadd.f32 %v193, 66.801315
    %v198 = vadd.f32 %v194, 66.801315
    %v199 = vadd.f32 %v195, 66.801315
    %v200 = vmul.f32 %v196, %v128
    %v201 = vmul.f32 %v197, %v129
    %v202 = vmul.f32 %v198, %v130
    %v203 = vmul.f32 %v199, %v131
    %v204 = vadd.f32 %v200, -13.280682
    %v205 = vadd.f32 %v201, -13.280682
    %v206 = vadd.f32 %v202, -13.280682
    %v207 = vadd.f32 %v203, -13.280682
    %v208 = vmul.f32 %v204, %v128
    %v209 = vmul.f32 %v205, %v129
    %v210 = vmul.f32 %v206, %v130
    %v211 = vmul.f32 %v207, %v131
    %v212 = vadd.f32 %v208, 1.0
    %v213 = vadd.f32 %v209, 1.0
    %v214 = vadd.f32 %v210, 1.0
    %v215 = vadd.f32 %v211, 1.0
    %v216 = vrcp.pop %v212
    %v217 = vmul.f32 %v212, %v216
    %v218 = vsub.f32 1.0, %v217
    %v219 = vmul.f32 %v216, %v218
    %v220 = vadd.f32 %v216, %v219
    %vm221 = vweird.f32 %v212
    %vm222 = vweird.f32 %v216
    %vm223 = vmor %vm221, %vm222
    %v224 = vsel %vm223, %v216, %v220
    %v225 = vand.u32 2147483647, %v212
    %vm226 = vcmp.eq.f32.partialorder %v225, 8.507059e+37
    %v227 = vand.u32 %v212, 2147483648
    %v228 = vor.u32 1.1754944e-38, %v227
    %v229 = vsel %vm226, %v228, %v224
    %v230 = vmul.f32 %v172, %v229
    %v231 = vrcp.pop %v213
    %v232 = vmul.f32 %v213, %v231
    %v233 = vsub.f32 1.0, %v232
    %v234 = vmul.f32 %v231, %v233
    %v235 = vadd.f32 %v231, %v234
    %vm236 = vweird.f32 %v213
    %vm237 = vweird.f32 %v231
    %vm238 = vmor %vm236, %vm237
    %v239 = vsel %vm238, %v231, %v235
    %v240 = vand.u32 2147483647, %v213
    %vm241 = vcmp.eq.f32.partialorder %v240, 8.507059e+37
    %v242 = vand.u32 %v213, 2147483648
    %v243 = vor.u32 1.1754944e-38, %v242
    %v244 = vsel %vm241, %v243, %v239
    %v245 = vmul.f32 %v173, %v244
    %v246 = vrcp.pop %v214
    %v247 = vmul.f32 %v214, %v246
    %v248 = vsub.f32 1.0, %v247
    %v249 = vmul.f32 %v246, %v248
    %v250 = vadd.f32 %v246, %v249
    %vm251 = vweird.f32 %v214
    %vm252 = vweird.f32 %v246
    %vm253 = vmor %vm251, %vm252
    %v254 = vsel %vm253, %v246, %v250
    %v255 = vand.u32 2147483647, %v214
    %vm256 = vcmp.eq.f32.partialorder %v255, 8.507059e+37
    %v257 = vand.u32 %v214, 2147483648
    %v258 = vor.u32 1.1754944e-38, %v257
    %v259 = vsel %vm256, %v258, %v254
    %v260 = vmul.f32 %v174, %v259
    %v261 = vrcp.pop %v215
    %v262 = vmul.f32 %v215, %v261
    %v263 = vsub.f32 1.0, %v262
    %v264 = vmul.f32 %v261, %v263
    %v265 = vadd.f32 %v261, %v264
    %vm266 = vweird.f32 %v215
    %vm267 = vweird.f32 %v261
    %vm268 = vmor %vm266, %vm267
    %v269 = vsel %vm268, %v261, %v265
    %v270 = vand.u32 2147483647, %v215
    %vm271 = vcmp.eq.f32.partialorder %v270, 8.507059e+37
    %v272 = vand.u32 %v215, 2147483648
    %v273 = vor.u32 1.1754944e-38, %v272
    %v274 = vsel %vm271, %v273, %v269
    %v275 = vmul.f32 %v175, %v274
    %v276 = vsub.f32 1.0, %v112
    %v277 = vsub.f32 1.0, %v113
    %v278 = vsub.f32 1.0, %v114
    %v279 = vsub.f32 1.0, %v115
    %v280 = vmin.f32 %v112, %v276
    %v281 = vmin.f32 %v113, %v277
    %v282 = vmin.f32 %v114, %v278
    %v283 = vmin.f32 %v115, %v279
    %v284 = vlog2.pop %v280
    %v285 = vmul.f32 %v284, 0.6931472
    %v286 = vlog2.pop %v281
    %v287 = vmul.f32 %v286, 0.6931472
    %v288 = vlog2.pop %v282
    %v289 = vmul.f32 %v288, 0.6931472
    %v290 = vlog2.pop %v283
    %v291 = vmul.f32 %v290, 0.6931472
    %v292 = vmul.f32 %v285, -2.0
    %v293 = vmul.f32 %v287, -2.0
    %v294 = vmul.f32 %v289, -2.0
    %v295 = vmul.f32 %v291, -2.0
    %v296 = vrsqrt.pop %v292
    %v297 = vmul.f32 %v296, %v292
    %v298 = vmul.f32 %v297, %v296
    %v299 = vmul.f32 0.5, %v298
    %v300 = vsub.f32 1.5, %v299
    %v301 = vmul.f32 %v296, %v300
    %v302 = vmul.f32 %v292, %v301
    %vm303 = vcmp.eq.f32.partialorder %v292, inf
    %v304 = vsel %vm303, %v292, %v302
    %vm305 = vcmp.eq.f32.partialorder %v292, 0.0
    %v306 = vand.u32 %v292, 2147483648
    %v307 = vsel %vm305, %v306, %v304
    %v308 = vrsqrt.pop %v293
    %v309 = vmul.f32 %v308, %v293
    %v310 = vmul.f32 %v309, %v308
    %v311 = vmul.f32 0.5, %v310
    %v312 = vsub.f32 1.5, %v311
    %v313 = vmul.f32 %v308, %v312
    %v314 = vmul.f32 %v293, %v313
    %vm315 = vcmp.eq.f32.partialorder %v293, inf
    %v316 = vsel %vm315, %v293, %v314
    %vm317 = vcmp.eq.f32.partialorder %v293, 0.0
    %v318 = vand.u32 %v293, 2147483648
    %v319 = vsel %vm317, %v318, %v316
    %v320 = vrsqrt.pop %v294
    %v321 = vmul.f32 %v320, %v294
    %v322 = vmul.f32 %v321, %v320
    %v323 = vmul.f32 0.5, %v322
    %v324 = vsub.f32 1.5, %v323
    %v325 = vmul.f32 %v320, %v324
    %v326 = vmul.f32 %v294, %v325
    %vm327 = vcmp.eq.f32.partialorder %v294, inf
    %v328 = vsel %vm327, %v294, %v326
    %vm329 = vcmp.eq.f32.partialorder %v294, 0.0
    %v330 = vand.u32 %v294, 2147483648
    %v331 = vsel %vm329, %v330, %v328
    %v332 = vrsqrt.pop %v295
    %v333 = vmul.f32 %v332, %v295
    %v334 = vmul.f32 %v333, %v332
    %v335 = vmul.f32 0.5, %v334
    %v336 = vsub.f32 1.5, %v335
    %v337 = vmul.f32 %v332, %v336
    %v338 = vmul.f32 %v295, %v337
    %vm339 = vcmp.eq.f32.partialorder %v295, inf
    %v340 = vsel %vm339, %v295, %v338
    %vm341 = vcmp.eq.f32.partialorder %v295, 0.0
    %v342 = vand.u32 %v295, 2147483648
    %v343 = vsel %vm341, %v342, %v340
    %v344 = vmul.f32 %v307, -0.007784894
    %v345 = vmul.f32 %v319, -0.007784894
    %v346 = vmul.f32 %v331, -0.007784894
    %v347 = vmul.f32 %v343, -0.007784894
    %v348 = vadd.f32 %v344, -0.32239646
    %v349 = vadd.f32 %v345, -0.32239646
    %v350 = vadd.f32 %v346, -0.32239646
    %v351 = vadd.f32 %v347, -0.32239646
    %v352 = vmul.f32 %v348, %v307
    %v353 = vmul.f32 %v349, %v319
    %v354 = vmul.f32 %v350, %v331
    %v355 = vmul.f32 %v351, %v343
    %v356 = vadd.f32 %v352, -2.4007583
    %v357 = vadd.f32 %v353, -2.4007583
    %v358 = vadd.f32 %v354, -2.4007583
    %v359 = vadd.f32 %v355, -2.4007583
    %v360 = vmul.f32 %v356, %v307
    %v361 = vmul.f32 %v357, %v319
    %v362 = vmul.f32 %v358, %v331
    %v363 = vmul.f32 %v359, %v343
    %v364 = vadd.f32 %v360, -2.5497324
    %v365 = vadd.f32 %v361, -2.5497324
    %v366 = vadd.f32 %v362, -2.5497324
    %v367 = vadd.f32 %v363, -2.5497324
    %v368 = vmul.f32 %v364, %v307
    %v369 = vmul.f32 %v365, %v319
    %v370 = vmul.f32 %v366, %v331
    %v371 = vmul.f32 %v367, %v343
    %v372 = vadd.f32 %v368, 4.3746643
    %v373 = vadd.f32 %v369, 4.3746643
    %v374 = vadd.f32 %v370, 4.3746643
    %v375 = vadd.f32 %v371, 4.3746643
    %v376 = vmul.f32 %v372, %v307
    %v377 = vmul.f32 %v373, %v319
    %v378 = vmul.f32 %v374, %v331
    %v379 = vmul.f32 %v375, %v343
    %v380 = vadd.f32 %v376, 2.938164
    %v381 = vadd.f32 %v377, 2.938164
    %v382 = vadd.f32 %v378, 2.938164
    %v383 = vadd.f32 %v379, 2.938164
    %v384 = vmul.f32 %v307, 0.007784696
    %v385 = vmul.f32 %v319, 0.007784696
    %v386 = vmul.f32 %v331, 0.007784696
    %v387 = vmul.f32 %v343, 0.007784696
    %v388 = vadd.f32 %v384, 0.32246712
    %v389 = vadd.f32 %v385, 0.32246712
    %v390 = vadd.f32 %v386, 0.32246712
    %v391 = vadd.f32 %v387, 0.32246712
    %v392 = vmul.f32 %v388, %v307
    %v393 = vmul.f32 %v389, %v319
    %v394 = vmul.f32 %v390, %v331
    %v395 = vmul.f32 %v391, %v343
    %v396 = vadd.f32 %v392, 2.4451342
    %v397 = vadd.f32 %v393, 2.4451342
    %v398 = vadd.f32 %v394, 2.4451342
    %v399 = vadd.f32 %v395, 2.4451342
    %v400 = vmul.f32 %v396, %v307
    %v401 = vmul.f32 %v397, %v319
    %v402 = vmul.f32 %v398, %v331
    %v403 = vmul.f32 %v399, %v343
    %v404 = vadd.f32 %v400, 3.7544086
    %v405 = vadd.f32 %v401, 3.7544086
    %v406 = vadd.f32 %v402, 3.7544086
    %v407 = vadd.f32 %v403, 3.7544086
    %v408 = vmul.f32 %v404, %v307
    %v409 = vmul.f32 %v405, %v319
    %v410 = vmul.f32 %v406, %v331
    %v411 = vmul.f32 %v407, %v343
    %v412 = vadd.f32 %v408, 1.0
    %v413 = vadd.f32 %v409, 1.0
    %v414 = vadd.f32 %v410, 1.0
    %v415 = vadd.f32 %v411, 1.0
    %v416 = vrcp.pop %v412
    %v417 = vmul.f32 %v412, %v416
    %v418 = vsub.f32 1.0, %v417
    %v419 = vmul.f32 %v416, %v418
    %v420 = vadd.f32 %v416, %v419
    %vm421 = vweird.f32 %v412
    %vm422 = vweird.f32 %v416
    %vm423 = vmor %vm421, %vm422
    %v424 = vsel %vm423, %v416, %v420
    %v425 = vand.u32 2147483647, %v412
    %vm426 = vcmp.eq.f32.partialorder %v425, 8.507059e+37
    %v427 = vand.u32 %v412, 2147483648
    %v428 = vor.u32 1.1754944e-38, %v427
    %v429 = vsel %vm426, %v428, %v424
    %v430 = vmul.f32 %v380, %v429
    %v431 = vrcp.pop %v413
    %v432 = vmul.f32 %v413, %v431
    %v433 = vsub.f32 1.0, %v432
    %v434 = vmul.f32 %v431, %v433
    %v435 = vadd.f32 %v431, %v434
    %vm436 = vweird.f32 %v413
    %vm437 = vweird.f32 %v431
    %vm438 = vmor %vm436, %vm437
    %v439 = vsel %vm438, %v431, %v435
    %v440 = vand.u32 2147483647, %v413
    %vm441 = vcmp.eq.f32.partialorder %v440, 8.507059e+37
    %v442 = vand.u32 %v413, 2147483648
    %v443 = vor.u32 1.1754944e-38, %v442
    %v444 = vsel %vm441, %v443, %v439
    %v445 = vmul.f32 %v381, %v444
    %v446 = vrcp.pop %v414
    %v447 = vmul.f32 %v414, %v446
    %v448 = vsub.f32 1.0, %v447
    %v449 = vmul.f32 %v446, %v448
    %v450 = vadd.f32 %v446, %v449
    %vm451 = vweird.f32 %v414
    %vm452 = vweird.f32 %v446
    %vm453 = vmor %vm451, %vm452
    %v454 = vsel %vm453, %v446, %v450
    %v455 = vand.u32 2147483647, %v414
    %vm456 = vcmp.eq.f32.partialorder %v455, 8.507059e+37
    %v457 = vand.u32 %v414, 2147483648
    %v458 = vor.u32 1.1754944e-38, %v457
    %v459 = vsel %vm456, %v458, %v454
    %v460 = vmul.f32 %v382, %v459
    %v461 = vrcp.pop %v415
    %v462 = vmul.f32 %v415, %v461
    %v463 = vsub.f32 1.0, %v462
    %v464 = vmul.f32 %v461, %v463
    %v465 = vadd.f32 %v461, %v464
    %vm466 = vweird.f32 %v415
    %vm467 = vweird.f32 %v461
    %vm468 = vmor %vm466, %vm467
    %v469 = vsel %vm468, %v461, %v465
    %v470 = vand.u32 2147483647, %v415
    %vm471 = vcmp.eq.f32.partialorder %v470, 8.507059e+37
    %v472 = vand.u32 %v415, 2147483648
    %v473 = vor.u32 1.1754944e-38, %v472
    %v474 = vsel %vm471, %v473, %v469
    %v475 = vmul.f32 %v383, %v474
    %vm476 = vcmp.lt.f32.partialorder %v112, 0.5
    %vm477 = vcmp.lt.f32.partialorder %v113, 0.5
    %vm478 = vcmp.lt.f32.partialorder %v114, 0.5
    %vm479 = vcmp.lt.f32.partialorder %v115, 0.5
    %v480 = vsub.f32 0.0, %v430
    %v481 = vsub.f32 0.0, %v445
    %v482 = vsub.f32 0.0, %v460
    %v483 = vsub.f32 0.0, %v475
    %v484 = vsel %vm476, %v430, %v480
    %v485 = vsel %vm477, %v445, %v481
    %v486 = vsel %vm478, %v460, %v482
    %v487 = vsel %vm479, %v475, %v483
    %vm488 = vcmp.lt.f32.partialorder %v112, 0.02425
    %vm489 = vcmp.lt.f32.partialorder %v113, 0.02425
    %vm490 = vcmp.lt.f32.partialorder %v114, 0.02425
    %vm491 = vcmp.lt.f32.partialorder %v115, 0.02425
    %vm492 = vcmp.gt.f32.partialorder %v112, 0.97575
    %vm493 = vcmp.gt.f32.partialorder %v113, 0.97575
    %vm494 = vcmp.gt.f32.partialorder %v114, 0.97575
    %vm495 = vcmp.gt.f32.partialorder %v115, 0.97575
    %vm496 = vmor %vm488, %vm492
    %vm497 = vmor %vm489, %vm493
    %vm498 = vmor %vm490, %vm494
    %vm499 = vmor %vm491, %vm495
    %v500 = vsel %vm496, %v484, %v230
    %v501 = vsel %vm497, %v485, %v245
    %v502 = vsel %vm498, %v486, %v260
    %v503 = vsel %vm499, %v487, %v275
    %504 = vst [vmem:[#allocation4] sm:$0xff] %v500
    %505 = vst [vmem:[#allocation4 + $0x8] sm:$0xff] %v501
    %506 = vst [vmem:[#allocation4 + $0x10] sm:$0xff] %v502
    %507 = vst [vmem:[#allocation4 + $0x18] sm:$0xff] %v503
    // Predicated region
    $region2: #{tpu_custom_call.1} parent=1 // pred_check
      _
    $region3: #{tpu_custom_call.1} parent=1 // pred_check_branch
      %509 = sbr.rel (0) target = $region5
    $region4: #{tpu_custom_call.1} parent=1 // pred_region
      %511 = vsyncadd [#allocation5], 0
      %s512 = sshll.u32 [#allocation4], 4
      %s513 = int_to_ptr.vmem [resolvable:$true] %s512
      %s514 = sshll.u32 %s1, 4
      %s515 = int_to_ptr.hbm [resolvable:$true] %s514
      %520 = dma.vmem_to_hbm [thread:$0]  %s513, 512, %s515, [#allocation5], 128, 128, 8
    $region5: #{tpu_custom_call.1} parent=1 // pred_fallthru
      _
    // Predicated region
    $region6: #{tpu_custom_call.1} parent=1 // pred_check
      _
    $region7: #{tpu_custom_call.1} parent=1 // pred_check_branch
      %522 = sbr.rel (0) target = $region9
    $region8: #{tpu_custom_call.1} parent=1 // pred_region
      %524 = dma.done [#allocation5], 512
    $region9: #{tpu_custom_call.1} parent=1 // pred_fallthru
      _
    %525 = vsyncpa [#allocation5], 1

</llo_original>
